<compile_context>
chip_gen: v7x
topology: tpu7x:2x2x1
jax: 0.10.0
libtpu: 0.0.40
codegen_flags: <defaults>
</compile_context>

<pallas_src>
import jax
import jax.numpy as jnp
from jax import lax
from jax.experimental import pallas as pl
from jax.experimental.pallas import tpu as pltpu

# Deterministic "parameters" of the sub-kernels (would be nn.Parameters in torch)
LENGTH_SCALE = 1.5
SIGNAL_VAR = 0.8
NEG_INV_2L2 = -1.0 / (2.0 * LENGTH_SCALE * LENGTH_SCALE)  # folded constant

# Tile cap: 512x512 f32 output tile (1 MiB) + (512, D) input tiles, all
# double-buffered, fits comfortably inside the default scoped VMEM limit on
# v5e/v6e and within v7x's smaller 64 MiB VMEM.
_MAX_TILE = 512


def _aggregate_kernel(xi_ref, xj_ref, xi_sq_ref, xj_sq_ref, out_ref):
    """One (TM, TN) output tile of add(RBF(xi, xj), Linear(xi, xj))."""
    xi = xi_ref[...]      # (TM, D) f32
    xj = xj_ref[...]      # (TN, D) f32

    # Linear kernel (also the cross term of the squared distance).
    # Contract on the last dim of both operands -> MXU-friendly, no transpose.
    dot = lax.dot_general(
        xi, xj,
        dimension_numbers=(((1,), (1,)), ((), ())),
        preferred_element_type=jnp.float32,
    )  # (TM, TN)

    # ||xi - xj||^2 = ||xi||^2 + ||xj||^2 - 2 * xi.xj  (norms precomputed
    # outside the kernel; (TM,1) + (1,TN) broadcasts on the VPU).
    d2 = xi_sq_ref[...] + xj_sq_ref[...] - 2.0 * dot
    d2 = jnp.maximum(d2, 0.0)

    # RBF kernel (single EUP exp per output element — the binding unit for
    # small D, so keep the argument a single fused expression).
    rbf = SIGNAL_VAR * jnp.exp(d2 * NEG_INV_2L2)

    # AggregateKernel.forward: op(first, second) with op = add
    out_ref[...] = (rbf + dot).astype(out_ref.dtype)


def _pick_tile(dim, need_lane_multiple):
    """Largest tile <= _MAX_TILE that satisfies TPU block-shape constraints."""
    if dim <= _MAX_TILE:
        return dim  # full extent is always legal
    quantum = 128 if need_lane_multiple else 8
    for t in (512, 384, 256, 128):
        if t <= _MAX_TILE and dim % t == 0 and t % quantum == 0:
            return t
    return dim  # fallback: single block along this axis


def aggregate_kernel(xi, xj):
    """Wrapper: AggregateKernel(RBF, Linear, add)(xi, xj) -> (N, M) f32."""
    xi = xi.astype(jnp.float32)
    xj = xj.astype(jnp.float32)
    N, D = xi.shape
    M, Dj = xj.shape
    assert D == Dj

    # Hoist the row squared norms out of the per-tile loop (review item 3):
    # each is tiny and DMA'd per tile instead of recomputed on the XLU.
    xi_sq = jnp.sum(xi * xi, axis=-1, keepdims=True)        # (N, 1)
    xj_sq = jnp.sum(xj * xj, axis=-1)[None, :]               # (1, M)

    tm = _pick_tile(N, need_lane_multiple=False)  # sublane dim of output
    tn = _pick_tile(M, need_lane_multiple=True)   # lane dim of output

    grid = (pl.cdiv(N, tm), pl.cdiv(M, tn))

    return pl.pallas_call(
        _aggregate_kernel,
        out_shape=jax.ShapeDtypeStruct((N, M), jnp.float32),
        grid=grid,
        in_specs=[
            pl.BlockSpec((tm, D), lambda i, j: (i, 0)),    # xi tile
            pl.BlockSpec((tn, D), lambda i, j: (j, 0)),    # xj tile
            pl.BlockSpec((tm, 1), lambda i, j: (i, 0)),    # ||xi||^2 tile
            pl.BlockSpec((1, tn), lambda i, j: (0, j)),    # ||xj||^2 tile
        ],
        out_specs=pl.BlockSpec((tm, tn), lambda i, j: (i, j)),
        compiler_params=pltpu.CompilerParams(
            # Every (i, j) output tile is independent -> both axes parallel
            # (sharded across TensorCores on v7x, neutral on v5e/v6e).
            dimension_semantics=("parallel", "parallel"),
        ),
    )(xi, xj, xi_sq, xj_sq)


def _reference(xi, xj):
    dot = xi @ xj.T
    d2 = (
        jnp.sum(xi * xi, axis=-1, keepdims=True)
        + jnp.sum(xj * xj, axis=-1, keepdims=True).T
        - 2.0 * dot
    )
    d2 = jnp.maximum(d2, 0.0)
    rbf = SIGNAL_VAR * jnp.exp(d2 * NEG_INV_2L2)
    return rbf + dot


if __name__ == "__main__":
    key = jax.random.PRNGKey(0)
    k1, k2, k3, k4 = jax.random.split(key, 4)

    # Main check: lane-dense shapes (M a multiple of 128) exercising the
    # tiled, pipelined path.
    N, M, D = 256, 256, 32
    xi = jax.random.normal(k1, (N, D), dtype=jnp.float32)
    xj = jax.random.normal(k2, (M, D), dtype=jnp.float32)
    out = jax.block_until_ready(aggregate_kernel(xi, xj))
    ref = _reference(xi, xj)
    assert out.shape == (N, M)
    assert jnp.allclose(out, ref, atol=1e-4, rtol=1e-4)

    # Small-shape check (full-extent blocks, masked-store path).
    n2, m2, d2 = 16, 16, 32
    xi2 = jax.random.normal(k3, (n2, d2), dtype=jnp.float32)
    xj2 = jax.random.normal(k4, (m2, d2), dtype=jnp.float32)
    out2 = jax.block_until_ready(aggregate_kernel(xi2, xj2))
    ref2 = _reference(xi2, xj2)
    assert out2.shape == (n2, m2)
    assert jnp.allclose(out2, ref2, atol=1e-4, rtol=1e-4)

    print("KERNEL_OK")
</pallas_src>

<mosaic_0001>
module attributes {stable_mosaic.version = 11 : i64} {
  func.func @_aggregate_kernel(%arg0: i32, %arg1: i32, %arg2: memref<256x32xf32, #tpu.memory_space<vmem>>, %arg3: memref<256x32xf32, #tpu.memory_space<vmem>>, %arg4: memref<256x1xf32, #tpu.memory_space<vmem>>, %arg5: memref<1x256xf32, #tpu.memory_space<vmem>>, %arg6: memref<256x256xf32, #tpu.memory_space<vmem>>) attributes {dimension_semantics = [#tpu.dimension_semantics<parallel>, #tpu.dimension_semantics<parallel>], iteration_bounds = array<i64: 1, 1>, scalar_prefetch = 0 : i64, scratch_operands = 0 : i64, tpu.core_type = #tpu.core_type<tc>, window_params = [{transform_indices = @transform_0, window_bounds = array<i64: 256, 32>}, {transform_indices = @transform_1, window_bounds = array<i64: 256, 32>}, {transform_indices = @transform_2, window_bounds = array<i64: 256, 1>}, {transform_indices = @transform_3, window_bounds = array<i64: 1, 256>}, {transform_indices = @transform_4, window_bounds = array<i64: 256, 256>}]} {
    %c0 = arith.constant 0 : index
    %c0_0 = arith.constant 0 : index
    %0 = vector.load %arg2[%c0, %c0_0] : memref<256x32xf32, #tpu.memory_space<vmem>>, vector<256x32xf32>
    %c0_1 = arith.constant 0 : index
    %c0_2 = arith.constant 0 : index
    %1 = vector.load %arg3[%c0_1, %c0_2] : memref<256x32xf32, #tpu.memory_space<vmem>>, vector<256x32xf32>
    %cst = arith.constant dense<0.000000e+00> : vector<256x256xf32>
    %2 = tpu.matmul %0, %1, %cst {dimension_numbers = #tpu.dot_dimension_numbers<[1], [1], [0], [0], [0, 0, 1, 0], [], []>} : vector<256x32xf32>, vector<256x32xf32>, vector<256x256xf32> -> vector<256x256xf32>
    %c0_3 = arith.constant 0 : index
    %c0_4 = arith.constant 0 : index
    %3 = vector.load %arg4[%c0_3, %c0_4] : memref<256x1xf32, #tpu.memory_space<vmem>>, vector<256x1xf32>
    %c0_5 = arith.constant 0 : index
    %c0_6 = arith.constant 0 : index
    %4 = vector.load %arg5[%c0_5, %c0_6] : memref<1x256xf32, #tpu.memory_space<vmem>>, vector<1x256xf32>
    %5 = vector.broadcast %3 : vector<256x1xf32> to vector<256x256xf32>
    %6 = vector.broadcast %4 : vector<1x256xf32> to vector<256x256xf32>
    %7 = arith.addf %5, %6 : vector<256x256xf32>
    %cst_7 = arith.constant 2.000000e+00 : f32
    %8 = vector.broadcast %cst_7 : f32 to vector<256x256xf32>
    %9 = arith.mulf %8, %2 : vector<256x256xf32>
    %10 = arith.subf %7, %9 : vector<256x256xf32>
    %cst_8 = arith.constant 0.000000e+00 : f32
    %11 = vector.broadcast %cst_8 : f32 to vector<256x256xf32>
    %12 = arith.maximumf %10, %11 : vector<256x256xf32>
    %cst_9 = arith.constant -0.222222224 : f32
    %13 = vector.broadcast %cst_9 : f32 to vector<256x256xf32>
    %14 = arith.mulf %12, %13 : vector<256x256xf32>
    %15 = math.exp %14 : vector<256x256xf32>
    %cst_10 = arith.constant 8.000000e-01 : f32
    %16 = vector.broadcast %cst_10 : f32 to vector<256x256xf32>
    %17 = arith.mulf %16, %15 : vector<256x256xf32>
    %18 = arith.addf %17, %2 : vector<256x256xf32>
    %c0_11 = arith.constant 0 : index
    %c0_12 = arith.constant 0 : index
    %19 = vector.load %arg6[%c0_11, %c0_12] : memref<256x256xf32, #tpu.memory_space<vmem>>, vector<256x256xf32>
    tpu.vector_store %arg6[%c0_11, %c0_12], %18 {strides = array<i32>} : memref<256x256xf32, #tpu.memory_space<vmem>>, vector<256x256xf32>,
    return
  }
  func.func @transform_0(%arg0: i32, %arg1: i32) -> (i32, i32) {
    %c0_i32 = arith.constant 0 : i32
    %c0_i32_0 = arith.constant 0 : i32
    return %arg0, %c0_i32 : i32, i32
  }
  func.func @transform_1(%arg0: i32, %arg1: i32) -> (i32, i32) {
    %c0_i32 = arith.constant 0 : i32
    %c0_i32_0 = arith.constant 0 : i32
    return %arg1, %c0_i32 : i32, i32
  }
  func.func @transform_2(%arg0: i32, %arg1: i32) -> (i32, i32) {
    %c0_i32 = arith.constant 0 : i32
    %c0_i32_0 = arith.constant 0 : i32
    return %arg0, %c0_i32 : i32, i32
  }
  func.func @transform_3(%arg0: i32, %arg1: i32) -> (i32, i32) {
    %c0_i32 = arith.constant 0 : i32
    %c0_i32_0 = arith.constant 0 : i32
    return %c0_i32, %arg1 : i32, i32
  }
  func.func @transform_4(%arg0: i32, %arg1: i32) -> (i32, i32) {
    %c0_i32 = arith.constant 0 : i32
    return %arg0, %arg1 : i32, i32
  }
}

</mosaic_0001>

<llo_original>
// kernel: tpu_custom_call.1
$region0: #{tpu_custom_call.1}
  #allocation0 [shape = 'u32[]', space=smem, size = 0x4, offset = 0x4, fixed_abs, tag = 'smem constant byte address 0x4 - core index']
  #allocation1 [shape = 'u32[144,128]{1,0:T(1,128)}', space=vmem, size = 0x12000, scoped, tag = 'internal scratch']
  %s0 = inlined_call_operand.vmem [shape: f32[256,32], index: 0, kind: input, shape index: {}]
  %s1 = inlined_call_operand.vmem [shape: f32[256,32], index: 1, kind: input, shape index: {}]
  %s2 = inlined_call_operand.vmem [shape: f32[256,1], index: 2, kind: input, shape index: {}]
  %s3 = inlined_call_operand.vmem [shape: f32[1,256], index: 3, kind: input, shape index: {}]
  %s4 = inlined_call_operand.hbm [shape: f32[256,256], index: 4, kind: output, shape index: {}]
  %s5 = sld [smem:[#allocation0]]
  $region26: #{tpu_custom_call.1} parent=0
    _
  %s7 = ssub.s32 1, %s5
  %s8 = scalar_select 0, %s7, %s5
  $region1: #{tpu_custom_call.1} parent=0
    #allocation2 [shape = 'u8[262144]{0}', space=vmem, size = 0x40000, scoped, tag = 'output window, operand 0, single buffered']
    #allocation3 [shape = 's32[1]{0}', space=sflag, size = 0x4, scoped, tag = 'scoped memory for tpu_custom_call.1']
    %9 = vsyncpa [#allocation3], 0
    // Predicated region
    $region2: #{tpu_custom_call.1} parent=1 // pred_check
      _
    $region3: #{tpu_custom_call.1} parent=1 // pred_check_branch
      %11 = sbr.rel (0) target = $region5
    $region4: #{tpu_custom_call.1} parent=1 // pred_region
      _
    $region5: #{tpu_custom_call.1} parent=1 // pred_fallthru
      _
    // Predicated region
    $region6: #{tpu_custom_call.1} parent=1 // pred_check
      _
    $region7: #{tpu_custom_call.1} parent=1 // pred_check_branch
      %13 = sbr.rel (0) target = $region9
    $region8: #{tpu_custom_call.1} parent=1 // pred_region
      _
    $region9: #{tpu_custom_call.1} parent=1 // pred_fallthru
      _
    // Predicated region
    $region10: #{tpu_custom_call.1} parent=1 // pred_check
      _
    $region11: #{tpu_custom_call.1} parent=1 // pred_check_branch
      %15 = sbr.rel (0) target = $region13
    $region12: #{tpu_custom_call.1} parent=1 // pred_region
      _
    $region13: #{tpu_custom_call.1} parent=1 // pred_fallthru
      _
    // Predicated region
    $region14: #{tpu_custom_call.1} parent=1 // pred_check
      _
    $region15: #{tpu_custom_call.1} parent=1 // pred_check_branch
      %17 = sbr.rel (0) target = $region17
    $region16: #{tpu_custom_call.1} parent=1 // pred_region
      _
    $region17: #{tpu_custom_call.1} parent=1 // pred_fallthru
      _
    %v18 = vld [vmem:[%s0] sm:$0xff]
    %v19 = vld [vmem:[%s0 + $0x8] sm:$0xff]
    %v20 = vld [vmem:[%s0 + $0x10] sm:$0xff]
    %v21 = vld [vmem:[%s0 + $0x18] sm:$0xff]
    %v22 = vld [vmem:[%s0 + $0x20] sm:$0xff]
    %v23 = vld [vmem:[%s0 + $0x28] sm:$0xff]
    %v24 = vld [vmem:[%s0 + $0x30] sm:$0xff]
    %v25 = vld [vmem:[%s0 + $0x38] sm:$0xff]
    %v26 = vld [vmem:[%s0 + $0x40] sm:$0xff]
    %v27 = vld [vmem:[%s0 + $0x48] sm:$0xff]
    %v28 = vld [vmem:[%s0 + $0x50] sm:$0xff]
    %v29 = vld [vmem:[%s0 + $0x58] sm:$0xff]
    %v30 = vld [vmem:[%s0 + $0x60] sm:$0xff]
    %v31 = vld [vmem:[%s0 + $0x68] sm:$0xff]
    %v32 = vld [vmem:[%s0 + $0x70] sm:$0xff]
    %v33 = vld [vmem:[%s0 + $0x78] sm:$0xff]
    %v34 = vld [vmem:[%s0 + $0x80] sm:$0xff]
    %v35 = vld [vmem:[%s0 + $0x88] sm:$0xff]
    %v36 = vld [vmem:[%s0 + $0x90] sm:$0xff]
    %v37 = vld [vmem:[%s0 + $0x98] sm:$0xff]
    %v38 = vld [vmem:[%s0 + $0xa0] sm:$0xff]
    %v39 = vld [vmem:[%s0 + $0xa8] sm:$0xff]
    %v40 = vld [vmem:[%s0 + $0xb0] sm:$0xff]
    %v41 = vld [vmem:[%s0 + $0xb8] sm:$0xff]
    %v42 = vld [vmem:[%s0 + $0xc0] sm:$0xff]
    %v43 = vld [vmem:[%s0 + $0xc8] sm:$0xff]
    %v44 = vld [vmem:[%s0 + $0xd0] sm:$0xff]
    %v45 = vld [vmem:[%s0 + $0xd8] sm:$0xff]
    %v46 = vld [vmem:[%s0 + $0xe0] sm:$0xff]
    %v47 = vld [vmem:[%s0 + $0xe8] sm:$0xff]
    %v48 = vld [vmem:[%s0 + $0xf0] sm:$0xff]
    %v49 = vld [vmem:[%s0 + $0xf8] sm:$0xff]
    %v50 = vld [vmem:[%s1] sm:$0xff]
    %v51 = vld [vmem:[%s1 + $0x8] sm:$0xff]
    %v52 = vld [vmem:[%s1 + $0x10] sm:$0xff]
    %v53 = vld [vmem:[%s1 + $0x18] sm:$0xff]
    %v54 = vld [vmem:[%s1 + $0x20] sm:$0xff]
    %v55 = vld [vmem:[%s1 + $0x28] sm:$0xff]
    %v56 = vld [vmem:[%s1 + $0x30] sm:$0xff]
    %v57 = vld [vmem:[%s1 + $0x38] sm:$0xff]
    %v58 = vld [vmem:[%s1 + $0x40] sm:$0xff]
    %v59 = vld [vmem:[%s1 + $0x48] sm:$0xff]
    %v60 = vld [vmem:[%s1 + $0x50] sm:$0xff]
    %v61 = vld [vmem:[%s1 + $0x58] sm:$0xff]
    %v62 = vld [vmem:[%s1 + $0x60] sm:$0xff]
    %v63 = vld [vmem:[%s1 + $0x68] sm:$0xff]
    %v64 = vld [vmem:[%s1 + $0x70] sm:$0xff]
    %v65 = vld [vmem:[%s1 + $0x78] sm:$0xff]
    %v66 = vld [vmem:[%s1 + $0x80] sm:$0xff]
    %v67 = vld [vmem:[%s1 + $0x88] sm:$0xff]
    %v68 = vld [vmem:[%s1 + $0x90] sm:$0xff]
    %v69 = vld [vmem:[%s1 + $0x98] sm:$0xff]
    %v70 = vld [vmem:[%s1 + $0xa0] sm:$0xff]
    %v71 = vld [vmem:[%s1 + $0xa8] sm:$0xff]
    %v72 = vld [vmem:[%s1 + $0xb0] sm:$0xff]
    %v73 = vld [vmem:[%s1 + $0xb8] sm:$0xff]
    %v74 = vld [vmem:[%s1 + $0xc0] sm:$0xff]
    %v75 = vld [vmem:[%s1 + $0xc8] sm:$0xff]
    %v76 = vld [vmem:[%s1 + $0xd0] sm:$0xff]
    %v77 = vld [vmem:[%s1 + $0xd8] sm:$0xff]
    %v78 = vld [vmem:[%s1 + $0xe0] sm:$0xff]
    %v79 = vld [vmem:[%s1 + $0xe8] sm:$0xff]
    %v80 = vld [vmem:[%s1 + $0xf0] sm:$0xff]
    %v81 = vld [vmem:[%s1 + $0xf8] sm:$0xff]
    %vm82 = vcmask 261120
    %v84 = vsel %vm82, %v18, 0
    %v87 = vsel %vm82, %v19, 0
    %v90 = vsel %vm82, %v20, 0
    %v93 = vsel %vm82, %v21, 0
    %v96 = vsel %vm82, %v22, 0
    %v99 = vsel %vm82, %v23, 0
    %v102 = vsel %vm82, %v24, 0
    %v105 = vsel %vm82, %v25, 0
    %v108 = vsel %vm82, %v26, 0
    %v111 = vsel %vm82, %v27, 0
    %v114 = vsel %vm82, %v28, 0
    %v117 = vsel %vm82, %v29, 0
    %v120 = vsel %vm82, %v30, 0
    %v123 = vsel %vm82, %v31, 0
    %v126 = vsel %vm82, %v32, 0
    %v129 = vsel %vm82, %v33, 0
    %v132 = vsel %vm82, %v34, 0
    %v135 = vsel %vm82, %v35, 0
    %v138 = vsel %vm82, %v36, 0
    %v141 = vsel %vm82, %v37, 0
    %v144 = vsel %vm82, %v38, 0
    %v147 = vsel %vm82, %v39, 0
    %v150 = vsel %vm82, %v40, 0
    %v153 = vsel %vm82, %v41, 0
    %v156 = vsel %vm82, %v42, 0
    %v159 = vsel %vm82, %v43, 0
    %v162 = vsel %vm82, %v44, 0
    %v165 = vsel %vm82, %v45, 0
    %v168 = vsel %vm82, %v46, 0
    %v171 = vsel %vm82, %v47, 0
    %v174 = vsel %vm82, %v48, 0
    %v177 = vsel %vm82, %v49, 0
    %v180 = vsel %vm82, %v50, 0
    %v183 = vsel %vm82, %v51, 0
    %v186 = vsel %vm82, %v52, 0
    %v189 = vsel %vm82, %v53, 0
    %v192 = vsel %vm82, %v54, 0
    %v195 = vsel %vm82, %v55, 0
    %v198 = vsel %vm82, %v56, 0
    %v201 = vsel %vm82, %v57, 0
    %v204 = vsel %vm82, %v58, 0
    %v207 = vsel %vm82, %v59, 0
    %v210 = vsel %vm82, %v60, 0
    %v213 = vsel %vm82, %v61, 0
    %v216 = vsel %vm82, %v62, 0
    %v219 = vsel %vm82, %v63, 0
    %v222 = vsel %vm82, %v64, 0
    %v225 = vsel %vm82, %v65, 0
    %v228 = vsel %vm82, %v66, 0
    %v231 = vsel %vm82, %v67, 0
    %v234 = vsel %vm82, %v68, 0
    %v237 = vsel %vm82, %v69, 0
    %v240 = vsel %vm82, %v70, 0
    %v243 = vsel %vm82, %v71, 0
    %v246 = vsel %vm82, %v72, 0
    %v249 = vsel %vm82, %v73, 0
    %v252 = vsel %vm82, %v74, 0
    %v255 = vsel %vm82, %v75, 0
    %v258 = vsel %vm82, %v76, 0
    %v261 = vsel %vm82, %v77, 0
    %v264 = vsel %vm82, %v78, 0
    %v267 = vsel %vm82, %v79, 0
    %v270 = vsel %vm82, %v80, 0
    %v273 = vsel %vm82, %v81, 0
    %275 = vmatprep.subr.mxu0 0.0
    %276 = vmatpush1.xpose.msra.mxu0 %v180
    %277 = vmatprep.subr.mxu0 0.0
    %278 = vmatpush1.xpose.msra.mxu0 %v183
    %279 = vmatprep.subr.mxu0 0.0
    %280 = vmatpush1.xpose.msra.mxu0 %v186
    %281 = vmatprep.subr.mxu0 0.0
    %282 = vmatpush1.xpose.msra.mxu0 %v189
    %283 = vmatprep.subr.mxu0 0.0
    %284 = vmatpush1.xpose.msra.mxu0 %v192
    %285 = vmatprep.subr.mxu0 0.0
    %286 = vmatpush1.xpose.msra.mxu0 %v195
    %287 = vmatprep.subr.mxu0 0.0
    %288 = vmatpush1.xpose.msra.mxu0 %v198
    %289 = vmatprep.subr.mxu0 0.0
    %290 = vmatpush1.xpose.msra.mxu0 %v201
    %291 = vmatprep.subr.mxu0 0.0
    %292 = vmatpush1.xpose.msra.mxu0 %v204
    %293 = vmatprep.subr.mxu0 0.0
    %294 = vmatpush1.xpose.msra.mxu0 %v207
    %295 = vmatprep.subr.mxu0 0.0
    %296 = vmatpush1.xpose.msra.mxu0 %v210
    %297 = vmatprep.subr.mxu0 0.0
    %298 = vmatpush1.xpose.msra.mxu0 %v213
    %299 = vmatprep.subr.mxu0 0.0
    %300 = vmatpush1.xpose.msra.mxu0 %v216
    %301 = vmatprep.subr.mxu0 0.0
    %302 = vmatpush1.xpose.msra.mxu0 %v219
    %303 = vmatprep.subr.mxu0 0.0
    %304 = vmatpush1.xpose.msra.mxu0 %v222
    %305 = vmatprep.subr.mxu0 0.0
    %306 = vmatpush1.xpose.msra.mxu0 %v225
    %307 = vmatprep.subr.mxu0 0.0
    %308 = vmatpush1.xpose.msra.mxu0 %v228
    %309 = vmatprep.subr.mxu0 0.0
    %310 = vmatpush1.xpose.msra.mxu0 %v231
    %311 = vmatprep.subr.mxu0 0.0
    %312 = vmatpush1.xpose.msra.mxu0 %v234
    %313 = vmatprep.subr.mxu0 0.0
    %314 = vmatpush1.xpose.msra.mxu0 %v237
    %315 = vmatprep.subr.mxu0 0.0
    %316 = vmatpush1.xpose.msra.mxu0 %v240
    %317 = vmatprep.subr.mxu0 0.0
    %318 = vmatpush1.xpose.msra.mxu0 %v243
    %319 = vmatprep.subr.mxu0 0.0
    %320 = vmatpush1.xpose.msra.mxu0 %v246
    %321 = vmatprep.subr.mxu0 0.0
    %322 = vmatpush1.xpose.msra.mxu0 %v249
    %323 = vmatprep.subr.mxu0 0.0
    %324 = vmatpush1.xpose.msra.mxu0 %v252
    %325 = vmatprep.subr.mxu0 0.0
    %326 = vmatpush1.xpose.msra.mxu0 %v255
    %327 = vmatprep.subr.mxu0 0.0
    %328 = vmatpush1.xpose.msra.mxu0 %v258
    %329 = vmatprep.subr.mxu0 0.0
    %330 = vmatpush1.xpose.msra.mxu0 %v261
    %331 = vmatprep.subr.mxu0 0.0
    %332 = vmatpush1.xpose.msra.mxu0 %v264
    %333 = vmatprep.subr.mxu0 0.0
    %334 = vmatpush1.xpose.msra.mxu0 %v267
    %335 = vmatprep.subr.mxu0 0.0
    %336 = vmatpush1.xpose.msra.mxu0 %v270
    %337 = vmatprep.subr.mxu0 0.0
    %338 = vmatpush1.xpose.msra.mxu0 %v273
    %339 = vmatprep.mubr.f32.mxu0 0.0
    %340 = vmatmul.mubr.f32.gmra.mrb[0].mxu0 %v84
    %v341 = vpop.f32.mrb[0].mxu0
    %v342 = vadd.f32 0.0, %v341
    %v343 = vpop.f32.mrb[0].mxu0
    %v344 = vadd.f32 0.0, %v343
    %345 = vmatprep.mubr.f32.mxu0 0.0
    %346 = vmatmul.mubr.f32.gmra.mrb[0].mxu0 %v87
    %v347 = vpop.f32.mrb[0].mxu0
    %v348 = vadd.f32 0.0, %v347
    %v349 = vpop.f32.mrb[0].mxu0
    %v350 = vadd.f32 0.0, %v349
    %351 = vmatprep.mubr.f32.mxu0 0.0
    %352 = vmatmul.mubr.f32.gmra.mrb[0].mxu0 %v90
    %v353 = vpop.f32.mrb[0].mxu0
    %v354 = vadd.f32 0.0, %v353
    %v355 = vpop.f32.mrb[0].mxu0
    %v356 = vadd.f32 0.0, %v355
    %357 = vmatprep.mubr.f32.mxu0 0.0
    %358 = vmatmul.mubr.f32.gmra.mrb[0].mxu0 %v93
    %v359 = vpop.f32.mrb[0].mxu0
    %v360 = vadd.f32 0.0, %v359
    %v361 = vpop.f32.mrb[0].mxu0
    %v362 = vadd.f32 0.0, %v361
    %363 = vmatprep.mubr.f32.mxu0 0.0
    %364 = vmatmul.mubr.f32.gmra.mrb[0].mxu0 %v96
    %v365 = vpop.f32.mrb[0].mxu0
    %v366 = vadd.f32 0.0, %v365
    %v367 = vpop.f32.mrb[0].mxu0
    %v368 = vadd.f32 0.0, %v367
    %369 = vmatprep.mubr.f32.mxu0 0.0
    %370 = vmatmul.mubr.f32.gmra.mrb[0].mxu0 %v99
    %v371 = vpop.f32.mrb[0].mxu0
    %v372 = vadd.f32 0.0, %v371
    %v373 = vpop.f32.mrb[0].mxu0
    %v374 = vadd.f32 0.0, %v373
    %375 = vmatprep.mubr.f32.mxu0 0.0
    %376 = vmatmul.mubr.f32.gmra.mrb[0].mxu0 %v102
    %v377 = vpop.f32.mrb[0].mxu0
    %v378 = vadd.f32 0.0, %v377
    %v379 = vpop.f32.mrb[0].mxu0
    %v380 = vadd.f32 0.0, %v379
    %381 = vmatprep.mubr.f32.mxu0 0.0
    %382 = vmatmul.mubr.f32.gmra.mrb[0].mxu0 %v105
    %v383 = vpop.f32.mrb[0].mxu0
    %v384 = vadd.f32 0.0, %v383
    %v385 = vpop.f32.mrb[0].mxu0
    %v386 = vadd.f32 0.0, %v385
    %387 = vmatprep.mubr.f32.mxu0 0.0
    %388 = vmatmul.mubr.f32.gmra.mrb[0].mxu0 %v108
    %v389 = vpop.f32.mrb[0].mxu0
    %v390 = vadd.f32 0.0, %v389
    %v391 = vpop.f32.mrb[0].mxu0
    %v392 = vadd.f32 0.0, %v391
    %393 = vmatprep.mubr.f32.mxu0 0.0
    %394 = vmatmul.mubr.f32.gmra.mrb[0].mxu0 %v111
    %v395 = vpop.f32.mrb[0].mxu0
    %v396 = vadd.f32 0.0, %v395
    %v397 = vpop.f32.mrb[0].mxu0
    %v398 = vadd.f32 0.0, %v397
    %399 = vmatprep.mubr.f32.mxu0 0.0
    %400 = vmatmul.mubr.f32.gmra.mrb[0].mxu0 %v114
    %v401 = vpop.f32.mrb[0].mxu0
    %v402 = vadd.f32 0.0, %v401
    %v403 = vpop.f32.mrb[0].mxu0
    %v404 = vadd.f32 0.0, %v403
    %405 = vmatprep.mubr.f32.mxu0 0.0
    %406 = vmatmul.mubr.f32.gmra.mrb[0].mxu0 %v117
    %v407 = vpop.f32.mrb[0].mxu0
    %v408 = vadd.f32 0.0, %v407
    %v409 = vpop.f32.mrb[0].mxu0
    %v410 = vadd.f32 0.0, %v409
    %411 = vmatprep.mubr.f32.mxu0 0.0
    %412 = vmatmul.mubr.f32.gmra.mrb[0].mxu0 %v120
    %v413 = vpop.f32.mrb[0].mxu0
    %v414 = vadd.f32 0.0, %v413
    %v415 = vpop.f32.mrb[0].mxu0
    %v416 = vadd.f32 0.0, %v415
    %417 = vmatprep.mubr.f32.mxu0 0.0
    %418 = vmatmul.mubr.f32.gmra.mrb[0].mxu0 %v123
    %v419 = vpop.f32.mrb[0].mxu0
    %v420 = vadd.f32 0.0, %v419
    %v421 = vpop.f32.mrb[0].mxu0
    %v422 = vadd.f32 0.0, %v421
    %423 = vmatprep.mubr.f32.mxu0 0.0
    %424 = vmatmul.mubr.f32.gmra.mrb[0].mxu0 %v126
    %v425 = vpop.f32.mrb[0].mxu0
    %v426 = vadd.f32 0.0, %v425
    %v427 = vpop.f32.mrb[0].mxu0
    %v428 = vadd.f32 0.0, %v427
    %429 = vmatprep.mubr.f32.mxu0 0.0
    %430 = vmatmul.mubr.f32.gmra.mrb[0].mxu0 %v129
    %v431 = vpop.f32.mrb[0].mxu0
    %v432 = vadd.f32 0.0, %v431
    %v433 = vpop.f32.mrb[0].mxu0
    %v434 = vadd.f32 0.0, %v433
    %435 = vmatprep.mubr.f32.mxu0 0.0
    %436 = vmatmul.mubr.f32.gmra.mrb[0].mxu0 %v132
    %v437 = vpop.f32.mrb[0].mxu0
    %v438 = vadd.f32 0.0, %v437
    %v439 = vpop.f32.mrb[0].mxu0
    %v440 = vadd.f32 0.0, %v439
    %441 = vmatprep.mubr.f32.mxu0 0.0
    %442 = vmatmul.mubr.f32.gmra.mrb[0].mxu0 %v135
    %v443 = vpop.f32.mrb[0].mxu0
    %v444 = vadd.f32 0.0, %v443
    %v445 = vpop.f32.mrb[0].mxu0
    %v446 = vadd.f32 0.0, %v445
    %447 = vmatprep.mubr.f32.mxu0 0.0
    %448 = vmatmul.mubr.f32.gmra.mrb[0].mxu0 %v138
    %v449 = vpop.f32.mrb[0].mxu0
    %v450 = vadd.f32 0.0, %v449
    %v451 = vpop.f32.mrb[0].mxu0
    %v452 = vadd.f32 0.0, %v451
    %453 = vmatprep.mubr.f32.mxu0 0.0
    %454 = vmatmul.mubr.f32.gmra.mrb[0].mxu0 %v141
    %v455 = vpop.f32.mrb[0].mxu0
    %v456 = vadd.f32 0.0, %v455
    %v457 = vpop.f32.mrb[0].mxu0
    %v458 = vadd.f32 0.0, %v457
    %459 = vmatprep.mubr.f32.mxu0 0.0
    %460 = vmatmul.mubr.f32.gmra.mrb[0].mxu0 %v144
    %v461 = vpop.f32.mrb[0].mxu0
    %v462 = vadd.f32 0.0, %v461
    %v463 = vpop.f32.mrb[0].mxu0
    %v464 = vadd.f32 0.0, %v463
    %465 = vmatprep.mubr.f32.mxu0 0.0
    %466 = vmatmul.mubr.f32.gmra.mrb[0].mxu0 %v147
    %v467 = vpop.f32.mrb[0].mxu0
    %v468 = vadd.f32 0.0, %v467
    %v469 = vpop.f32.mrb[0].mxu0
    %v470 = vadd.f32 0.0, %v469
    %471 = vmatprep.mubr.f32.mxu0 0.0
    %472 = vmatmul.mubr.f32.gmra.mrb[0].mxu0 %v150
    %v473 = vpop.f32.mrb[0].mxu0
    %v474 = vadd.f32 0.0, %v473
    %v475 = vpop.f32.mrb[0].mxu0
    %v476 = vadd.f32 0.0, %v475
    %477 = vmatprep.mubr.f32.mxu0 0.0
    %478 = vmatmul.mubr.f32.gmra.mrb[0].mxu0 %v153
    %v479 = vpop.f32.mrb[0].mxu0
    %v480 = vadd.f32 0.0, %v479
    %v481 = vpop.f32.mrb[0].mxu0
    %v482 = vadd.f32 0.0, %v481
    %483 = vmatprep.mubr.f32.mxu0 0.0
    %484 = vmatmul.mubr.f32.gmra.mrb[0].mxu0 %v156
    %v485 = vpop.f32.mrb[0].mxu0
    %v486 = vadd.f32 0.0, %v485
    %v487 = vpop.f32.mrb[0].mxu0
    %v488 = vadd.f32 0.0, %v487
    %489 = vmatprep.mubr.f32.mxu0 0.0
    %490 = vmatmul.mubr.f32.gmra.mrb[0].mxu0 %v159
    %v491 = vpop.f32.mrb[0].mxu0
    %v492 = vadd.f32 0.0, %v491
    %v493 = vpop.f32.mrb[0].mxu0
    %v494 = vadd.f32 0.0, %v493
    %495 = vmatprep.mubr.f32.mxu0 0.0
    %496 = vmatmul.mubr.f32.gmra.mrb[0].mxu0 %v162
    %v497 = vpop.f32.mrb[0].mxu0
    %v498 = vadd.f32 0.0, %v497
    %v499 = vpop.f32.mrb[0].mxu0
    %v500 = vadd.f32 0.0, %v499
    %501 = vmatprep.mubr.f32.mxu0 0.0
    %502 = vmatmul.mubr.f32.gmra.mrb[0].mxu0 %v165
    %v503 = vpop.f32.mrb[0].mxu0
    %v504 = vadd.f32 0.0, %v503
    %v505 = vpop.f32.mrb[0].mxu0
    %v506 = vadd.f32 0.0, %v505
    %507 = vmatprep.mubr.f32.mxu0 0.0
    %508 = vmatmul.mubr.f32.gmra.mrb[0].mxu0 %v168
    %v509 = vpop.f32.mrb[0].mxu0
    %v510 = vadd.f32 0.0, %v509
    %v511 = vpop.f32.mrb[0].mxu0
    %v512 = vadd.f32 0.0, %v511
    %513 = vmatprep.mubr.f32.mxu0 0.0
    %514 = vmatmul.mubr.f32.gmra.mrb[0].mxu0 %v171
    %v515 = vpop.f32.mrb[0].mxu0
    %v516 = vadd.f32 0.0, %v515
    %v517 = vpop.f32.mrb[0].mxu0
    %v518 = vadd.f32 0.0, %v517
    %519 = vmatprep.mubr.f32.mxu0 0.0
    %520 = vmatmul.mubr.f32.gmra.mrb[0].mxu0 %v174
    %v521 = vpop.f32.mrb[0].mxu0
    %v522 = vadd.f32 0.0, %v521
    %v523 = vpop.f32.mrb[0].mxu0
    %v524 = vadd.f32 0.0, %v523
    %525 = vmatprep.mubr.f32.mxu0 0.0
    %526 = vmatmul.mubr.f32.gmra.mrb[0].mxu0 %v177
    %v527 = vpop.f32.mrb[0].mxu0
    %v528 = vadd.f32 0.0, %v527
    %v529 = vpop.f32.mrb[0].mxu0
    %v530 = vadd.f32 0.0, %v529
    %531 = vdwg.mxu0
    %v532 = vld [vmem:[%s2] sm:$0xff]
    %v533 = vld [vmem:[%s2 + $0x8] sm:$0xff]
    %v534 = vld [vmem:[%s2 + $0x10] sm:$0xff]
    %v535 = vld [vmem:[%s2 + $0x18] sm:$0xff]
    %v536 = vld [vmem:[%s2 + $0x20] sm:$0xff]
    %v537 = vld [vmem:[%s2 + $0x28] sm:$0xff]
    %v538 = vld [vmem:[%s2 + $0x30] sm:$0xff]
    %v539 = vld [vmem:[%s2 + $0x38] sm:$0xff]
    %v540 = vld [vmem:[%s2 + $0x40] sm:$0xff]
    %v541 = vld [vmem:[%s2 + $0x48] sm:$0xff]
    %v542 = vld [vmem:[%s2 + $0x50] sm:$0xff]
    %v543 = vld [vmem:[%s2 + $0x58] sm:$0xff]
    %v544 = vld [vmem:[%s2 + $0x60] sm:$0xff]
    %v545 = vld [vmem:[%s2 + $0x68] sm:$0xff]
    %v546 = vld [vmem:[%s2 + $0x70] sm:$0xff]
    %v547 = vld [vmem:[%s2 + $0x78] sm:$0xff]
    %v548 = vld [vmem:[%s2 + $0x80] sm:$0xff]
    %v549 = vld [vmem:[%s2 + $0x88] sm:$0xff]
    %v550 = vld [vmem:[%s2 + $0x90] sm:$0xff]
    %v551 = vld [vmem:[%s2 + $0x98] sm:$0xff]
    %v552 = vld [vmem:[%s2 + $0xa0] sm:$0xff]
    %v553 = vld [vmem:[%s2 + $0xa8] sm:$0xff]
    %v554 = vld [vmem:[%s2 + $0xb0] sm:$0xff]
    %v555 = vld [vmem:[%s2 + $0xb8] sm:$0xff]
    %v556 = vld [vmem:[%s2 + $0xc0] sm:$0xff]
    %v557 = vld [vmem:[%s2 + $0xc8] sm:$0xff]
    %v558 = vld [vmem:[%s2 + $0xd0] sm:$0xff]
    %v559 = vld [vmem:[%s2 + $0xd8] sm:$0xff]
    %v560 = vld [vmem:[%s2 + $0xe0] sm:$0xff]
    %v561 = vld [vmem:[%s2 + $0xe8] sm:$0xff]
    %v562 = vld [vmem:[%s2 + $0xf0] sm:$0xff]
    %v563 = vld [vmem:[%s2 + $0xf8] sm:$0xff]
    %v564 = vld [vmem:[%s3] sm:$0x3]
    %566 = vset.pattern.permute.xlu0 0
    %567 = vperm.xlu0 %566, %v532
    %v568 = vpop.permute.xlu0 %567
    %571 = vset.pattern.permute.xlu0 0
    %572 = vperm.xlu0 %571, %v533
    %v573 = vpop.permute.xlu0 %572
    %576 = vset.pattern.permute.xlu0 0
    %577 = vperm.xlu0 %576, %v534
    %v578 = vpop.permute.xlu0 %577
    %581 = vset.pattern.permute.xlu0 0
    %582 = vperm.xlu0 %581, %v535
    %v583 = vpop.permute.xlu0 %582
    %586 = vset.pattern.permute.xlu0 0
    %587 = vperm.xlu0 %586, %v536
    %v588 = vpop.permute.xlu0 %587
    %591 = vset.pattern.permute.xlu0 0
    %592 = vperm.xlu0 %591, %v537
    %v593 = vpop.permute.xlu0 %592
    %596 = vset.pattern.permute.xlu0 0
    %597 = vperm.xlu0 %596, %v538
    %v598 = vpop.permute.xlu0 %597
    %601 = vset.pattern.permute.xlu0 0
    %602 = vperm.xlu0 %601, %v539
    %v603 = vpop.permute.xlu0 %602
    %606 = vset.pattern.permute.xlu0 0
    %607 = vperm.xlu0 %606, %v540
    %v608 = vpop.permute.xlu0 %607
    %611 = vset.pattern.permute.xlu0 0
    %612 = vperm.xlu0 %611, %v541
    %v613 = vpop.permute.xlu0 %612
    %616 = vset.pattern.permute.xlu0 0
    %617 = vperm.xlu0 %616, %v542
    %v618 = vpop.permute.xlu0 %617
    %621 = vset.pattern.permute.xlu0 0
    %622 = vperm.xlu0 %621, %v543
    %v623 = vpop.permute.xlu0 %622
    %626 = vset.pattern.permute.xlu0 0
    %627 = vperm.xlu0 %626, %v544
    %v628 = vpop.permute.xlu0 %627
    %631 = vset.pattern.permute.xlu0 0
    %632 = vperm.xlu0 %631, %v545
    %v633 = vpop.permute.xlu0 %632
    %636 = vset.pattern.permute.xlu0 0
    %637 = vperm.xlu0 %636, %v546
    %v638 = vpop.permute.xlu0 %637
    %641 = vset.pattern.permute.xlu0 0
    %642 = vperm.xlu0 %641, %v547
    %v643 = vpop.permute.xlu0 %642
    %646 = vset.pattern.permute.xlu0 0
    %647 = vperm.xlu0 %646, %v548
    %v648 = vpop.permute.xlu0 %647
    %651 = vset.pattern.permute.xlu0 0
    %652 = vperm.xlu0 %651, %v549
    %v653 = vpop.permute.xlu0 %652
    %656 = vset.pattern.permute.xlu0 0
    %657 = vperm.xlu0 %656, %v550
    %v658 = vpop.permute.xlu0 %657
    %661 = vset.pattern.permute.xlu0 0
    %662 = vperm.xlu0 %661, %v551
    %v663 = vpop.permute.xlu0 %662
    %666 = vset.pattern.permute.xlu0 0
    %667 = vperm.xlu0 %666, %v552
    %v668 = vpop.permute.xlu0 %667
    %671 = vset.pattern.permute.xlu0 0
    %672 = vperm.xlu0 %671, %v553
    %v673 = vpop.permute.xlu0 %672
    %676 = vset.pattern.permute.xlu0 0
    %677 = vperm.xlu0 %676, %v554
    %v678 = vpop.permute.xlu0 %677
    %681 = vset.pattern.permute.xlu0 0
    %682 = vperm.xlu0 %681, %v555
    %v683 = vpop.permute.xlu0 %682
    %686 = vset.pattern.permute.xlu0 0
    %687 = vperm.xlu0 %686, %v556
    %v688 = vpop.permute.xlu0 %687
    %691 = vset.pattern.permute.xlu0 0
    %692 = vperm.xlu0 %691, %v557
    %v693 = vpop.permute.xlu0 %692
    %696 = vset.pattern.permute.xlu0 0
    %697 = vperm.xlu0 %696, %v558
    %v698 = vpop.permute.xlu0 %697
    %701 = vset.pattern.permute.xlu0 0
    %702 = vperm.xlu0 %701, %v559
    %v703 = vpop.permute.xlu0 %702
    %706 = vset.pattern.permute.xlu0 0
    %707 = vperm.xlu0 %706, %v560
    %v708 = vpop.permute.xlu0 %707
    %711 = vset.pattern.permute.xlu0 0
    %712 = vperm.xlu0 %711, %v561
    %v713 = vpop.permute.xlu0 %712
    %716 = vset.pattern.permute.xlu0 0
    %717 = vperm.xlu0 %716, %v562
    %v718 = vpop.permute.xlu0 %717
    %721 = vset.pattern.permute.xlu0 0
    %722 = vperm.xlu0 %721, %v563
    %v723 = vpop.permute.xlu0 %722
    %v726 = vlaneseq
    %v727 = vshrl.u32 %v726, 7
    %v728 = vsub.s32 0, %v727
    %v729 = vrot.slane %v564, %v728
    %v730 = vlaneseq
    %v731 = vshrl.u32 %v730, 7
    %v732 = vsub.s32 1, %v731
    %v733 = vrot.slane %v564, %v732
    %v736 = vadd.f32 %v568, %v729
    %v737 = vadd.f32 %v568, %v733
    %v738 = vadd.f32 %v573, %v729
    %v739 = vadd.f32 %v573, %v733
    %v740 = vadd.f32 %v578, %v729
    %v741 = vadd.f32 %v578, %v733
    %v742 = vadd.f32 %v583, %v729
    %v743 = vadd.f32 %v583, %v733
    %v744 = vadd.f32 %v588, %v729
    %v745 = vadd.f32 %v588, %v733
    %v746 = vadd.f32 %v593, %v729
    %v747 = vadd.f32 %v593, %v733
    %v748 = vadd.f32 %v598, %v729
    %v749 = vadd.f32 %v598, %v733
    %v750 = vadd.f32 %v603, %v729
    %v751 = vadd.f32 %v603, %v733
    %v752 = vadd.f32 %v608, %v729
    %v753 = vadd.f32 %v608, %v733
    %v754 = vadd.f32 %v613, %v729
    %v755 = vadd.f32 %v613, %v733
    %v756 = vadd.f32 %v618, %v729
    %v757 = vadd.f32 %v618, %v733
    %v758 = vadd.f32 %v623, %v729
    %v759 = vadd.f32 %v623, %v733
    %v760 = vadd.f32 %v628, %v729
    %v761 = vadd.f32 %v628, %v733
    %v762 = vadd.f32 %v633, %v729
    %v763 = vadd.f32 %v633, %v733
    %v764 = vadd.f32 %v638, %v729
    %v765 = vadd.f32 %v638, %v733
    %v766 = vadd.f32 %v643, %v729
    %v767 = vadd.f32 %v643, %v733
    %v768 = vadd.f32 %v648, %v729
    %v769 = vadd.f32 %v648, %v733
    %v770 = vadd.f32 %v653, %v729
    %v771 = vadd.f32 %v653, %v733
    %v772 = vadd.f32 %v658, %v729
    %v773 = vadd.f32 %v658, %v733
    %v774 = vadd.f32 %v663, %v729
    %v775 = vadd.f32 %v663, %v733
    %v776 = vadd.f32 %v668, %v729
    %v777 = vadd.f32 %v668, %v733
    %v778 = vadd.f32 %v673, %v729
    %v779 = vadd.f32 %v673, %v733
    %v780 = vadd.f32 %v678, %v729
    %v781 = vadd.f32 %v678, %v733
    %v782 = vadd.f32 %v683, %v729
    %v783 = vadd.f32 %v683, %v733
    %v784 = vadd.f32 %v688, %v729
    %v785 = vadd.f32 %v688, %v733
    %v786 = vadd.f32 %v693, %v729
    %v787 = vadd.f32 %v693, %v733
    %v788 = vadd.f32 %v698, %v729
    %v789 = vadd.f32 %v698, %v733
    %v790 = vadd.f32 %v703, %v729
    %v791 = vadd.f32 %v703, %v733
    %v792 = vadd.f32 %v708, %v729
    %v793 = vadd.f32 %v708, %v733
    %v794 = vadd.f32 %v713, %v729
    %v795 = vadd.f32 %v713, %v733
    %v796 = vadd.f32 %v718, %v729
    %v797 = vadd.f32 %v718, %v733
    %v798 = vadd.f32 %v723, %v729
    %v799 = vadd.f32 %v723, %v733
    %v800 = vmul.f32 %v342, 2.0
    %v801 = vmul.f32 %v344, 2.0
    %v802 = vmul.f32 %v348, 2.0
    %v803 = vmul.f32 %v350, 2.0
    %v804 = vmul.f32 %v354, 2.0
    %v805 = vmul.f32 %v356, 2.0
    %v806 = vmul.f32 %v360, 2.0
    %v807 = vmul.f32 %v362, 2.0
    %v808 = vmul.f32 %v366, 2.0
    %v809 = vmul.f32 %v368, 2.0
    %v810 = vmul.f32 %v372, 2.0
    %v811 = vmul.f32 %v374, 2.0
    %v812 = vmul.f32 %v378, 2.0
    %v813 = vmul.f32 %v380, 2.0
    %v814 = vmul.f32 %v384, 2.0
    %v815 = vmul.f32 %v386, 2.0
    %v816 = vmul.f32 %v390, 2.0
    %v817 = vmul.f32 %v392, 2.0
    %v818 = vmul.f32 %v396, 2.0
    %v819 = vmul.f32 %v398, 2.0
    %v820 = vmul.f32 %v402, 2.0
    %v821 = vmul.f32 %v404, 2.0
    %v822 = vmul.f32 %v408, 2.0
    %v823 = vmul.f32 %v410, 2.0
    %v824 = vmul.f32 %v414, 2.0
    %v825 = vmul.f32 %v416, 2.0
    %v826 = vmul.f32 %v420, 2.0
    %v827 = vmul.f32 %v422, 2.0
    %v828 = vmul.f32 %v426, 2.0
    %v829 = vmul.f32 %v428, 2.0
    %v830 = vmul.f32 %v432, 2.0
    %v831 = vmul.f32 %v434, 2.0
    %v832 = vmul.f32 %v438, 2.0
    %v833 = vmul.f32 %v440, 2.0
    %v834 = vmul.f32 %v444, 2.0
    %v835 = vmul.f32 %v446, 2.0
    %v836 = vmul.f32 %v450, 2.0
    %v837 = vmul.f32 %v452, 2.0
    %v838 = vmul.f32 %v456, 2.0
    %v839 = vmul.f32 %v458, 2.0
    %v840 = vmul.f32 %v462, 2.0
    %v841 = vmul.f32 %v464, 2.0
    %v842 = vmul.f32 %v468, 2.0
    %v843 = vmul.f32 %v470, 2.0
    %v844 = vmul.f32 %v474, 2.0
    %v845 = vmul.f32 %v476, 2.0
    %v846 = vmul.f32 %v480, 2.0
    %v847 = vmul.f32 %v482, 2.0
    %v848 = vmul.f32 %v486, 2.0
    %v849 = vmul.f32 %v488, 2.0
    %v850 = vmul.f32 %v492, 2.0
    %v851 = vmul.f32 %v494, 2.0
    %v852 = vmul.f32 %v498, 2.0
    %v853 = vmul.f32 %v500, 2.0
    %v854 = vmul.f32 %v504, 2.0
    %v855 = vmul.f32 %v506, 2.0
    %v856 = vmul.f32 %v510, 2.0
    %v857 = vmul.f32 %v512, 2.0
    %v858 = vmul.f32 %v516, 2.0
    %v859 = vmul.f32 %v518, 2.0
    %v860 = vmul.f32 %v522, 2.0
    %v861 = vmul.f32 %v524, 2.0
    %v862 = vmul.f32 %v528, 2.0
    %v863 = vmul.f32 %v530, 2.0
    %v864 = vsub.f32 %v736, %v800
    %v865 = vsub.f32 %v737, %v801
    %v866 = vsub.f32 %v738, %v802
    %v867 = vsub.f32 %v739, %v803
    %v868 = vsub.f32 %v740, %v804
    %v869 = vsub.f32 %v741, %v805
    %v870 = vsub.f32 %v742, %v806
    %v871 = vsub.f32 %v743, %v807
    %v872 = vsub.f32 %v744, %v808
    %v873 = vsub.f32 %v745, %v809
    %v874 = vsub.f32 %v746, %v810
    %v875 = vsub.f32 %v747, %v811
    %v876 = vsub.f32 %v748, %v812
    %v877 = vsub.f32 %v749, %v813
    %v878 = vsub.f32 %v750, %v814
    %v879 = vsub.f32 %v751, %v815
    %v880 = vsub.f32 %v752, %v816
    %v881 = vsub.f32 %v753, %v817
    %v882 = vsub.f32 %v754, %v818
    %v883 = vsub.f32 %v755, %v819
    %v884 = vsub.f32 %v756, %v820
    %v885 = vsub.f32 %v757, %v821
    %v886 = vsub.f32 %v758, %v822
    %v887 = vsub.f32 %v759, %v823
    %v888 = vsub.f32 %v760, %v824
    %v889 = vsub.f32 %v761, %v825
    %v890 = vsub.f32 %v762, %v826
    %v891 = vsub.f32 %v763, %v827
    %v892 = vsub.f32 %v764, %v828
    %v893 = vsub.f32 %v765, %v829
    %v894 = vsub.f32 %v766, %v830
    %v895 = vsub.f32 %v767, %v831
    %v896 = vsub.f32 %v768, %v832
    %v897 = vsub.f32 %v769, %v833
    %v898 = vsub.f32 %v770, %v834
    %v899 = vsub.f32 %v771, %v835
    %v900 = vsub.f32 %v772, %v836
    %v901 = vsub.f32 %v773, %v837
    %v902 = vsub.f32 %v774, %v838
    %v903 = vsub.f32 %v775, %v839
    %v904 = vsub.f32 %v776, %v840
    %v905 = vsub.f32 %v777, %v841
    %v906 = vsub.f32 %v778, %v842
    %v907 = vsub.f32 %v779, %v843
    %v908 = vsub.f32 %v780, %v844
    %v909 = vsub.f32 %v781, %v845
    %v910 = vsub.f32 %v782, %v846
    %v911 = vsub.f32 %v783, %v847
    %v912 = vsub.f32 %v784, %v848
    %v913 = vsub.f32 %v785, %v849
    %v914 = vsub.f32 %v786, %v850
    %v915 = vsub.f32 %v787, %v851
    %v916 = vsub.f32 %v788, %v852
    %v917 = vsub.f32 %v789, %v853
    %v918 = vsub.f32 %v790, %v854
    %v919 = vsub.f32 %v791, %v855
    %v920 = vsub.f32 %v792, %v856
    %v921 = vsub.f32 %v793, %v857
    %v922 = vsub.f32 %v794, %v858
    %v923 = vsub.f32 %v795, %v859
    %v924 = vsub.f32 %v796, %v860
    %v925 = vsub.f32 %v797, %v861
    %v926 = vsub.f32 %v798, %v862
    %v927 = vsub.f32 %v799, %v863
    %v928 = vmax.f32 %v864, 0.0
    %v929 = vmax.f32 %v865, 0.0
    %v930 = vmax.f32 %v866, 0.0
    %v931 = vmax.f32 %v867, 0.0
    %v932 = vmax.f32 %v868, 0.0
    %v933 = vmax.f32 %v869, 0.0
    %v934 = vmax.f32 %v870, 0.0
    %v935 = vmax.f32 %v871, 0.0
    %v936 = vmax.f32 %v872, 0.0
    %v937 = vmax.f32 %v873, 0.0
    %v938 = vmax.f32 %v874, 0.0
    %v939 = vmax.f32 %v875, 0.0
    %v940 = vmax.f32 %v876, 0.0
    %v941 = vmax.f32 %v877, 0.0
    %v942 = vmax.f32 %v878, 0.0
    %v943 = vmax.f32 %v879, 0.0
    %v944 = vmax.f32 %v880, 0.0
    %v945 = vmax.f32 %v881, 0.0
    %v946 = vmax.f32 %v882, 0.0
    %v947 = vmax.f32 %v883, 0.0
    %v948 = vmax.f32 %v884, 0.0
    %v949 = vmax.f32 %v885, 0.0
    %v950 = vmax.f32 %v886, 0.0
    %v951 = vmax.f32 %v887, 0.0
    %v952 = vmax.f32 %v888, 0.0
    %v953 = vmax.f32 %v889, 0.0
    %v954 = vmax.f32 %v890, 0.0
    %v955 = vmax.f32 %v891, 0.0
    %v956 = vmax.f32 %v892, 0.0
    %v957 = vmax.f32 %v893, 0.0
    %v958 = vmax.f32 %v894, 0.0
    %v959 = vmax.f32 %v895, 0.0
    %v960 = vmax.f32 %v896, 0.0
    %v961 = vmax.f32 %v897, 0.0
    %v962 = vmax.f32 %v898, 0.0
    %v963 = vmax.f32 %v899, 0.0
    %v964 = vmax.f32 %v900, 0.0
    %v965 = vmax.f32 %v901, 0.0
    %v966 = vmax.f32 %v902, 0.0
    %v967 = vmax.f32 %v903, 0.0
    %v968 = vmax.f32 %v904, 0.0
    %v969 = vmax.f32 %v905, 0.0
    %v970 = vmax.f32 %v906, 0.0
    %v971 = vmax.f32 %v907, 0.0
    %v972 = vmax.f32 %v908, 0.0
    %v973 = vmax.f32 %v909, 0.0
    %v974 = vmax.f32 %v910, 0.0
    %v975 = vmax.f32 %v911, 0.0
    %v976 = vmax.f32 %v912, 0.0
    %v977 = vmax.f32 %v913, 0.0
    %v978 = vmax.f32 %v914, 0.0
    %v979 = vmax.f32 %v915, 0.0
    %v980 = vmax.f32 %v916, 0.0
    %v981 = vmax.f32 %v917, 0.0
    %v982 = vmax.f32 %v918, 0.0
    %v983 = vmax.f32 %v919, 0.0
    %v984 = vmax.f32 %v920, 0.0
    %v985 = vmax.f32 %v921, 0.0
    %v986 = vmax.f32 %v922, 0.0
    %v987 = vmax.f32 %v923, 0.0
    %v988 = vmax.f32 %v924, 0.0
    %v989 = vmax.f32 %v925, 0.0
    %v990 = vmax.f32 %v926, 0.0
    %v991 = vmax.f32 %v927, 0.0
    %v992 = vmul.f32 %v928, -0.22222222
    %v993 = vmul.f32 %v929, -0.22222222
    %v994 = vmul.f32 %v930, -0.22222222
    %v995 = vmul.f32 %v931, -0.22222222
    %v996 = vmul.f32 %v932, -0.22222222
    %v997 = vmul.f32 %v933, -0.22222222
    %v998 = vmul.f32 %v934, -0.22222222
    %v999 = vmul.f32 %v935, -0.22222222
    %v1000 = vmul.f32 %v936, -0.22222222
    %v1001 = vmul.f32 %v937, -0.22222222
    %v1002 = vmul.f32 %v938, -0.22222222
    %v1003 = vmul.f32 %v939, -0.22222222
    %v1004 = vmul.f32 %v940, -0.22222222
    %v1005 = vmul.f32 %v941, -0.22222222
    %v1006 = vmul.f32 %v942, -0.22222222
    %v1007 = vmul.f32 %v943, -0.22222222
    %v1008 = vmul.f32 %v944, -0.22222222
    %v1009 = vmul.f32 %v945, -0.22222222
    %v1010 = vmul.f32 %v946, -0.22222222
    %v1011 = vmul.f32 %v947, -0.22222222
    %v1012 = vmul.f32 %v948, -0.22222222
    %v1013 = vmul.f32 %v949, -0.22222222
    %v1014 = vmul.f32 %v950, -0.22222222
    %v1015 = vmul.f32 %v951, -0.22222222
    %v1016 = vmul.f32 %v952, -0.22222222
    %v1017 = vmul.f32 %v953, -0.22222222
    %v1018 = vmul.f32 %v954, -0.22222222
    %v1019 = vmul.f32 %v955, -0.22222222
    %v1020 = vmul.f32 %v956, -0.22222222
    %v1021 = vmul.f32 %v957, -0.22222222
    %v1022 = vmul.f32 %v958, -0.22222222
    %v1023 = vmul.f32 %v959, -0.22222222
    %v1024 = vmul.f32 %v960, -0.22222222
    %v1025 = vmul.f32 %v961, -0.22222222
    %v1026 = vmul.f32 %v962, -0.22222222
    %v1027 = vmul.f32 %v963, -0.22222222
    %v1028 = vmul.f32 %v964, -0.22222222
    %v1029 = vmul.f32 %v965, -0.22222222
    %v1030 = vmul.f32 %v966, -0.22222222
    %v1031 = vmul.f32 %v967, -0.22222222
    %v1032 = vmul.f32 %v968, -0.22222222
    %v1033 = vmul.f32 %v969, -0.22222222
    %v1034 = vmul.f32 %v970, -0.22222222
    %v1035 = vmul.f32 %v971, -0.22222222
    %v1036 = vmul.f32 %v972, -0.22222222
    %v1037 = vmul.f32 %v973, -0.22222222
    %v1038 = vmul.f32 %v974, -0.22222222
    %v1039 = vmul.f32 %v975, -0.22222222
    %v1040 = vmul.f32 %v976, -0.22222222
    %v1041 = vmul.f32 %v977, -0.22222222
    %v1042 = vmul.f32 %v978, -0.22222222
    %v1043 = vmul.f32 %v979, -0.22222222
    %v1044 = vmul.f32 %v980, -0.22222222
    %v1045 = vmul.f32 %v981, -0.22222222
    %v1046 = vmul.f32 %v982, -0.22222222
    %v1047 = vmul.f32 %v983, -0.22222222
    %v1048 = vmul.f32 %v984, -0.22222222
    %v1049 = vmul.f32 %v985, -0.22222222
    %v1050 = vmul.f32 %v986, -0.22222222
    %v1051 = vmul.f32 %v987, -0.22222222
    %v1052 = vmul.f32 %v988, -0.22222222
    %v1053 = vmul.f32 %v989, -0.22222222
    %v1054 = vmul.f32 %v990, -0.22222222
    %v1055 = vmul.f32 %v991, -0.22222222
    %v1056 = vmul.f32 %v992, 1.442695
    %v1057 = vpow.pop %v1056
    %v1058 = vmul.f32 %v993, 1.442695
    %v1059 = vpow.pop %v1058
    %v1060 = vmul.f32 %v994, 1.442695
    %v1061 = vpow.pop %v1060
    %v1062 = vmul.f32 %v995, 1.442695
    %v1063 = vpow.pop %v1062
    %v1064 = vmul.f32 %v996, 1.442695
    %v1065 = vpow.pop %v1064
    %v1066 = vmul.f32 %v997, 1.442695
    %v1067 = vpow.pop %v1066
    %v1068 = vmul.f32 %v998, 1.442695
    %v1069 = vpow.pop %v1068
    %v1070 = vmul.f32 %v999, 1.442695
    %v1071 = vpow.pop %v1070
    %v1072 = vmul.f32 %v1000, 1.442695
    %v1073 = vpow.pop %v1072
    %v1074 = vmul.f32 %v1001, 1.442695
    %v1075 = vpow.pop %v1074
    %v1076 = vmul.f32 %v1002, 1.442695
    %v1077 = vpow.pop %v1076
    %v1078 = vmul.f32 %v1003, 1.442695
    %v1079 = vpow.pop %v1078
    %v1080 = vmul.f32 %v1004, 1.442695
    %v1081 = vpow.pop %v1080
    %v1082 = vmul.f32 %v1005, 1.442695
    %v1083 = vpow.pop %v1082
    %v1084 = vmul.f32 %v1006, 1.442695
    %v1085 = vpow.pop %v1084
    %v1086 = vmul.f32 %v1007, 1.442695
    %v1087 = vpow.pop %v1086
    %v1088 = vmul.f32 %v1008, 1.442695
    %v1089 = vpow.pop %v1088
    %v1090 = vmul.f32 %v1009, 1.442695
    %v1091 = vpow.pop %v1090
    %v1092 = vmul.f32 %v1010, 1.442695
    %v1093 = vpow.pop %v1092
    %v1094 = vmul.f32 %v1011, 1.442695
    %v1095 = vpow.pop %v1094
    %v1096 = vmul.f32 %v1012, 1.442695
    %v1097 = vpow.pop %v1096
    %v1098 = vmul.f32 %v1013, 1.442695
    %v1099 = vpow.pop %v1098
    %v1100 = vmul.f32 %v1014, 1.442695
    %v1101 = vpow.pop %v1100
    %v1102 = vmul.f32 %v1015, 1.442695
    %v1103 = vpow.pop %v1102
    %v1104 = vmul.f32 %v1016, 1.442695
    %v1105 = vpow.pop %v1104
    %v1106 = vmul.f32 %v1017, 1.442695
    %v1107 = vpow.pop %v1106
    %v1108 = vmul.f32 %v1018, 1.442695
    %v1109 = vpow.pop %v1108
    %v1110 = vmul.f32 %v1019, 1.442695
    %v1111 = vpow.pop %v1110
    %v1112 = vmul.f32 %v1020, 1.442695
    %v1113 = vpow.pop %v1112
    %v1114 = vmul.f32 %v1021, 1.442695
    %v1115 = vpow.pop %v1114
    %v1116 = vmul.f32 %v1022, 1.442695
    %v1117 = vpow.pop %v1116
    %v1118 = vmul.f32 %v1023, 1.442695
    %v1119 = vpow.pop %v1118
    %v1120 = vmul.f32 %v1024, 1.442695
    %v1121 = vpow.pop %v1120
    %v1122 = vmul.f32 %v1025, 1.442695
    %v1123 = vpow.pop %v1122
    %v1124 = vmul.f32 %v1026, 1.442695
    %v1125 = vpow.pop %v1124
    %v1126 = vmul.f32 %v1027, 1.442695
    %v1127 = vpow.pop %v1126
    %v1128 = vmul.f32 %v1028, 1.442695
    %v1129 = vpow.pop %v1128
    %v1130 = vmul.f32 %v1029, 1.442695
    %v1131 = vpow.pop %v1130
    %v1132 = vmul.f32 %v1030, 1.442695
    %v1133 = vpow.pop %v1132
    %v1134 = vmul.f32 %v1031, 1.442695
    %v1135 = vpow.pop %v1134
    %v1136 = vmul.f32 %v1032, 1.442695
    %v1137 = vpow.pop %v1136
    %v1138 = vmul.f32 %v1033, 1.442695
    %v1139 = vpow.pop %v1138
    %v1140 = vmul.f32 %v1034, 1.442695
    %v1141 = vpow.pop %v1140
    %v1142 = vmul.f32 %v1035, 1.442695
    %v1143 = vpow.pop %v1142
    %v1144 = vmul.f32 %v1036, 1.442695
    %v1145 = vpow.pop %v1144
    %v1146 = vmul.f32 %v1037, 1.442695
    %v1147 = vpow.pop %v1146
    %v1148 = vmul.f32 %v1038, 1.442695
    %v1149 = vpow.pop %v1148
    %v1150 = vmul.f32 %v1039, 1.442695
    %v1151 = vpow.pop %v1150
    %v1152 = vmul.f32 %v1040, 1.442695
    %v1153 = vpow.pop %v1152
    %v1154 = vmul.f32 %v1041, 1.442695
    %v1155 = vpow.pop %v1154
    %v1156 = vmul.f32 %v1042, 1.442695
    %v1157 = vpow.pop %v1156
    %v1158 = vmul.f32 %v1043, 1.442695
    %v1159 = vpow.pop %v1158
    %v1160 = vmul.f32 %v1044, 1.442695
    %v1161 = vpow.pop %v1160
    %v1162 = vmul.f32 %v1045, 1.442695
    %v1163 = vpow.pop %v1162
    %v1164 = vmul.f32 %v1046, 1.442695
    %v1165 = vpow.pop %v1164
    %v1166 = vmul.f32 %v1047, 1.442695
    %v1167 = vpow.pop %v1166
    %v1168 = vmul.f32 %v1048, 1.442695
    %v1169 = vpow.pop %v1168
    %v1170 = vmul.f32 %v1049, 1.442695
    %v1171 = vpow.pop %v1170
    %v1172 = vmul.f32 %v1050, 1.442695
    %v1173 = vpow.pop %v1172
    %v1174 = vmul.f32 %v1051, 1.442695
    %v1175 = vpow.pop %v1174
    %v1176 = vmul.f32 %v1052, 1.442695
    %v1177 = vpow.pop %v1176
    %v1178 = vmul.f32 %v1053, 1.442695
    %v1179 = vpow.pop %v1178
    %v1180 = vmul.f32 %v1054, 1.442695
    %v1181 = vpow.pop %v1180
    %v1182 = vmul.f32 %v1055, 1.442695
    %v1183 = vpow.pop %v1182
    %v1184 = vmul.f32 %v1057, 0.8
    %v1185 = vmul.f32 %v1059, 0.8
    %v1186 = vmul.f32 %v1061, 0.8
    %v1187 = vmul.f32 %v1063, 0.8
    %v1188 = vmul.f32 %v1065, 0.8
    %v1189 = vmul.f32 %v1067, 0.8
    %v1190 = vmul.f32 %v1069, 0.8
    %v1191 = vmul.f32 %v1071, 0.8
    %v1192 = vmul.f32 %v1073, 0.8
    %v1193 = vmul.f32 %v1075, 0.8
    %v1194 = vmul.f32 %v1077, 0.8
    %v1195 = vmul.f32 %v1079, 0.8
    %v1196 = vmul.f32 %v1081, 0.8
    %v1197 = vmul.f32 %v1083, 0.8
    %v1198 = vmul.f32 %v1085, 0.8
    %v1199 = vmul.f32 %v1087, 0.8
    %v1200 = vmul.f32 %v1089, 0.8
    %v1201 = vmul.f32 %v1091, 0.8
    %v1202 = vmul.f32 %v1093, 0.8
    %v1203 = vmul.f32 %v1095, 0.8
    %v1204 = vmul.f32 %v1097, 0.8
    %v1205 = vmul.f32 %v1099, 0.8
    %v1206 = vmul.f32 %v1101, 0.8
    %v1207 = vmul.f32 %v1103, 0.8
    %v1208 = vmul.f32 %v1105, 0.8
    %v1209 = vmul.f32 %v1107, 0.8
    %v1210 = vmul.f32 %v1109, 0.8
    %v1211 = vmul.f32 %v1111, 0.8
    %v1212 = vmul.f32 %v1113, 0.8
    %v1213 = vmul.f32 %v1115, 0.8
    %v1214 = vmul.f32 %v1117, 0.8
    %v1215 = vmul.f32 %v1119, 0.8
    %v1216 = vmul.f32 %v1121, 0.8
    %v1217 = vmul.f32 %v1123, 0.8
    %v1218 = vmul.f32 %v1125, 0.8
    %v1219 = vmul.f32 %v1127, 0.8
    %v1220 = vmul.f32 %v1129, 0.8
    %v1221 = vmul.f32 %v1131, 0.8
    %v1222 = vmul.f32 %v1133, 0.8
    %v1223 = vmul.f32 %v1135, 0.8
    %v1224 = vmul.f32 %v1137, 0.8
    %v1225 = vmul.f32 %v1139, 0.8
    %v1226 = vmul.f32 %v1141, 0.8
    %v1227 = vmul.f32 %v1143, 0.8
    %v1228 = vmul.f32 %v1145, 0.8
    %v1229 = vmul.f32 %v1147, 0.8
    %v1230 = vmul.f32 %v1149, 0.8
    %v1231 = vmul.f32 %v1151, 0.8
    %v1232 = vmul.f32 %v1153, 0.8
    %v1233 = vmul.f32 %v1155, 0.8
    %v1234 = vmul.f32 %v1157, 0.8
    %v1235 = vmul.f32 %v1159, 0.8
    %v1236 = vmul.f32 %v1161, 0.8
    %v1237 = vmul.f32 %v1163, 0.8
    %v1238 = vmul.f32 %v1165, 0.8
    %v1239 = vmul.f32 %v1167, 0.8
    %v1240 = vmul.f32 %v1169, 0.8
    %v1241 = vmul.f32 %v1171, 0.8
    %v1242 = vmul.f32 %v1173, 0.8
    %v1243 = vmul.f32 %v1175, 0.8
    %v1244 = vmul.f32 %v1177, 0.8
    %v1245 = vmul.f32 %v1179, 0.8
    %v1246 = vmul.f32 %v1181, 0.8
    %v1247 = vmul.f32 %v1183, 0.8
    %v1248 = vadd.f32 %v1184, %v342
    %v1249 = vadd.f32 %v1185, %v344
    %v1250 = vadd.f32 %v1186, %v348
    %v1251 = vadd.f32 %v1187, %v350
    %v1252 = vadd.f32 %v1188, %v354
    %v1253 = vadd.f32 %v1189, %v356
    %v1254 = vadd.f32 %v1190, %v360
    %v1255 = vadd.f32 %v1191, %v362
    %v1256 = vadd.f32 %v1192, %v366
    %v1257 = vadd.f32 %v1193, %v368
    %v1258 = vadd.f32 %v1194, %v372
    %v1259 = vadd.f32 %v1195, %v374
    %v1260 = vadd.f32 %v1196, %v378
    %v1261 = vadd.f32 %v1197, %v380
    %v1262 = vadd.f32 %v1198, %v384
    %v1263 = vadd.f32 %v1199, %v386
    %v1264 = vadd.f32 %v1200, %v390
    %v1265 = vadd.f32 %v1201, %v392
    %v1266 = vadd.f32 %v1202, %v396
    %v1267 = vadd.f32 %v1203, %v398
    %v1268 = vadd.f32 %v1204, %v402
    %v1269 = vadd.f32 %v1205, %v404
    %v1270 = vadd.f32 %v1206, %v408
    %v1271 = vadd.f32 %v1207, %v410
    %v1272 = vadd.f32 %v1208, %v414
    %v1273 = vadd.f32 %v1209, %v416
    %v1274 = vadd.f32 %v1210, %v420
    %v1275 = vadd.f32 %v1211, %v422
    %v1276 = vadd.f32 %v1212, %v426
    %v1277 = vadd.f32 %v1213, %v428
    %v1278 = vadd.f32 %v1214, %v432
    %v1279 = vadd.f32 %v1215, %v434
    %v1280 = vadd.f32 %v1216, %v438
    %v1281 = vadd.f32 %v1217, %v440
    %v1282 = vadd.f32 %v1218, %v444
    %v1283 = vadd.f32 %v1219, %v446
    %v1284 = vadd.f32 %v1220, %v450
    %v1285 = vadd.f32 %v1221, %v452
    %v1286 = vadd.f32 %v1222, %v456
    %v1287 = vadd.f32 %v1223, %v458
    %v1288 = vadd.f32 %v1224, %v462
    %v1289 = vadd.f32 %v1225, %v464
    %v1290 = vadd.f32 %v1226, %v468
    %v1291 = vadd.f32 %v1227, %v470
    %v1292 = vadd.f32 %v1228, %v474
    %v1293 = vadd.f32 %v1229, %v476
    %v1294 = vadd.f32 %v1230, %v480
    %v1295 = vadd.f32 %v1231, %v482
    %v1296 = vadd.f32 %v1232, %v486
    %v1297 = vadd.f32 %v1233, %v488
    %v1298 = vadd.f32 %v1234, %v492
    %v1299 = vadd.f32 %v1235, %v494
    %v1300 = vadd.f32 %v1236, %v498
    %v1301 = vadd.f32 %v1237, %v500
    %v1302 = vadd.f32 %v1238, %v504
    %v1303 = vadd.f32 %v1239, %v506
    %v1304 = vadd.f32 %v1240, %v510
    %v1305 = vadd.f32 %v1241, %v512
    %v1306 = vadd.f32 %v1242, %v516
    %v1307 = vadd.f32 %v1243, %v518
    %v1308 = vadd.f32 %v1244, %v522
    %v1309 = vadd.f32 %v1245, %v524
    %v1310 = vadd.f32 %v1246, %v528
    %v1311 = vadd.f32 %v1247, %v530
    %1312 = vst [vmem:[#allocation2] sm:$0xff] %v1248
    %1313 = vst [vmem:[#allocation2 + $0x8] sm:$0xff] %v1249
    %1314 = vst [vmem:[#allocation2 + $0x10] sm:$0xff] %v1250
    %1315 = vst [vmem:[#allocation2 + $0x18] sm:$0xff] %v1251
    %1316 = vst [vmem:[#allocation2 + $0x20] sm:$0xff] %v1252
    %1317 = vst [vmem:[#allocation2 + $0x28] sm:$0xff] %v1253
    %1318 = vst [vmem:[#allocation2 + $0x30] sm:$0xff] %v1254
    %1319 = vst [vmem:[#allocation2 + $0x38] sm:$0xff] %v1255
    %1320 = vst [vmem:[#allocation2 + $0x40] sm:$0xff] %v1256
    %1321 = vst [vmem:[#allocation2 + $0x48] sm:$0xff] %v1257
    %1322 = vst [vmem:[#allocation2 + $0x50] sm:$0xff] %v1258
    %1323 = vst [vmem:[#allocation2 + $0x58] sm:$0xff] %v1259
    %1324 = vst [vmem:[#allocation2 + $0x60] sm:$0xff] %v1260
    %1325 = vst [vmem:[#allocation2 + $0x68] sm:$0xff] %v1261
    %1326 = vst [vmem:[#allocation2 + $0x70] sm:$0xff] %v1262
    %1327 = vst [vmem:[#allocation2 + $0x78] sm:$0xff] %v1263
    %1328 = vst [vmem:[#allocation2 + $0x80] sm:$0xff] %v1264
    %1329 = vst [vmem:[#allocation2 + $0x88] sm:$0xff] %v1265
    %1330 = vst [vmem:[#allocation2 + $0x90] sm:$0xff] %v1266
    %1331 = vst [vmem:[#allocation2 + $0x98] sm:$0xff] %v1267
    %1332 = vst [vmem:[#allocation2 + $0xa0] sm:$0xff] %v1268
    %1333 = vst [vmem:[#allocation2 + $0xa8] sm:$0xff] %v1269
    %1334 = vst [vmem:[#allocation2 + $0xb0] sm:$0xff] %v1270
    %1335 = vst [vmem:[#allocation2 + $0xb8] sm:$0xff] %v1271
    %1336 = vst [vmem:[#allocation2 + $0xc0] sm:$0xff] %v1272
    %1337 = vst [vmem:[#allocation2 + $0xc8] sm:$0xff] %v1273
    %1338 = vst [vmem:[#allocation2 + $0xd0] sm:$0xff] %v1274
    %1339 = vst [vmem:[#allocation2 + $0xd8] sm:$0xff] %v1275
    %1340 = vst [vmem:[#allocation2 + $0xe0] sm:$0xff] %v1276
    %1341 = vst [vmem:[#allocation2 + $0xe8] sm:$0xff] %v1277
    %1342 = vst [vmem:[#allocation2 + $0xf0] sm:$0xff] %v1278
    %1343 = vst [vmem:[#allocation2 + $0xf8] sm:$0xff] %v1279
    %1344 = vst [vmem:[#allocation2 + $0x100] sm:$0xff] %v1280
    %1345 = vst [vmem:[#allocation2 + $0x108] sm:$0xff] %v1281
    %1346 = vst [vmem:[#allocation2 + $0x110] sm:$0xff] %v1282
    %1347 = vst [vmem:[#allocation2 + $0x118] sm:$0xff] %v1283
    %1348 = vst [vmem:[#allocation2 + $0x120] sm:$0xff] %v1284
    %1349 = vst [vmem:[#allocation2 + $0x128] sm:$0xff] %v1285
    %1350 = vst [vmem:[#allocation2 + $0x130] sm:$0xff] %v1286
    %1351 = vst [vmem:[#allocation2 + $0x138] sm:$0xff] %v1287
    %1352 = vst [vmem:[#allocation2 + $0x140] sm:$0xff] %v1288
    %1353 = vst [vmem:[#allocation2 + $0x148] sm:$0xff] %v1289
    %1354 = vst [vmem:[#allocation2 + $0x150] sm:$0xff] %v1290
    %1355 = vst [vmem:[#allocation2 + $0x158] sm:$0xff] %v1291
    %1356 = vst [vmem:[#allocation2 + $0x160] sm:$0xff] %v1292
    %1357 = vst [vmem:[#allocation2 + $0x168] sm:$0xff] %v1293
    %1358 = vst [vmem:[#allocation2 + $0x170] sm:$0xff] %v1294
    %1359 = vst [vmem:[#allocation2 + $0x178] sm:$0xff] %v1295
    %1360 = vst [vmem:[#allocation2 + $0x180] sm:$0xff] %v1296
    %1361 = vst [vmem:[#allocation2 + $0x188] sm:$0xff] %v1297
    %1362 = vst [vmem:[#allocation2 + $0x190] sm:$0xff] %v1298
    %1363 = vst [vmem:[#allocation2 + $0x198] sm:$0xff] %v1299
    %1364 = vst [vmem:[#allocation2 + $0x1a0] sm:$0xff] %v1300
    %1365 = vst [vmem:[#allocation2 + $0x1a8] sm:$0xff] %v1301
    %1366 = vst [vmem:[#allocation2 + $0x1b0] sm:$0xff] %v1302
    %1367 = vst [vmem:[#allocation2 + $0x1b8] sm:$0xff] %v1303
    %1368 = vst [vmem:[#allocation2 + $0x1c0] sm:$0xff] %v1304
    %1369 = vst [vmem:[#allocation2 + $0x1c8] sm:$0xff] %v1305
    %1370 = vst [vmem:[#allocation2 + $0x1d0] sm:$0xff] %v1306
    %1371 = vst [vmem:[#allocation2 + $0x1d8] sm:$0xff] %v1307
    %1372 = vst [vmem:[#allocation2 + $0x1e0] sm:$0xff] %v1308
    %1373 = vst [vmem:[#allocation2 + $0x1e8] sm:$0xff] %v1309
    %1374 = vst [vmem:[#allocation2 + $0x1f0] sm:$0xff] %v1310
    %1375 = vst [vmem:[#allocation2 + $0x1f8] sm:$0xff] %v1311
    // Predicated region
    $region18: #{tpu_custom_call.1} parent=1 // pred_check
      _
    $region19: #{tpu_custom_call.1} parent=1 // pred_check_branch
      %1377 = sbr.rel (0) target = $region21
    $region20: #{tpu_custom_call.1} parent=1 // pred_region
      %s1379 = ssub.s32 8192, 8192
      %1380 = vsyncadd [#allocation3], %s1379
      %s1381 = sshll.u32 [#allocation2], 4
      %s1382 = int_to_ptr.vmem [resolvable:$true] %s1381
      %1387 = dma.vmem_to_hbm [thread:$0]  %s1382, 8192, %s4, [#allocation3], 256, 256, 16
    $region21: #{tpu_custom_call.1} parent=1 // pred_fallthru
      _
    // Predicated region
    $region22: #{tpu_custom_call.1} parent=1 // pred_check
      _
    $region23: #{tpu_custom_call.1} parent=1 // pred_check_branch
      %1389 = sbr.rel (0) target = $region25
    $region24: #{tpu_custom_call.1} parent=1 // pred_region
      %1390 = dma.done [#allocation3], 8192
    $region25: #{tpu_custom_call.1} parent=1 // pred_fallthru
      _
    %1391 = vsyncpa [#allocation3], 1

</llo_original>
